<compile_context>
chip_gen: v7x
topology: tpu7x:2x2x1
jax: 0.10.0
libtpu: 0.0.40
codegen_flags: <defaults>
</compile_context>

<pallas_src>
import functools

import jax
import jax.numpy as jnp
from jax.experimental import pallas as pl
from jax.experimental.pallas import tpu as pltpu


def _round_up(x, m):
    return (x + m - 1) // m * m


def _pad2d(m, rows, cols):
    return jnp.pad(m, ((0, rows - m.shape[0]), (0, cols - m.shape[1])))


def _gin_layer_kernel(a_ref, x_ref, w_ref, b_ref, out_ref, acc_ref, *, apply_relu):
    k = pl.program_id(1)

    @pl.when(k == 0)
    def _():
        acc_ref[...] = jnp.zeros_like(acc_ref)

    # Aggregate-first: the N^2 contraction runs at the (narrow) input width.
    acc_ref[...] += jnp.dot(a_ref[...], x_ref[...],
                            preferred_element_type=jnp.float32)   # (TM, Fin) f32

    @pl.when(k == pl.num_programs(1) - 1)
    def _():
        h = jnp.dot(acc_ref[...].astype(w_ref.dtype), w_ref[...],
                    preferred_element_type=jnp.float32)            # (TM, Fout) f32
        h = h + b_ref[...].astype(jnp.float32)
        if apply_relu:
            h = jnp.maximum(h, 0.0)
        out_ref[...] = h.astype(out_ref.dtype)


def _gin_layer(a_pad, x_pad, w_pad, b_pad, *, apply_relu, tm, tk, out_dtype):
    n_pad = a_pad.shape[0]
    fin = x_pad.shape[1]
    fout = w_pad.shape[1]
    grid = (n_pad // tm, n_pad // tk)

    kernel = functools.partial(_gin_layer_kernel, apply_relu=apply_relu)

    isz = jnp.dtype(a_pad.dtype).itemsize
    flops = 2 * n_pad * n_pad * fin + 2 * n_pad * fin * fout
    bytes_accessed = (isz * (n_pad * n_pad + n_pad * fin + fin * fout)
                      + 4 * fout
                      + jnp.dtype(out_dtype).itemsize * n_pad * fout)

    return pl.pallas_call(
        kernel,
        out_shape=jax.ShapeDtypeStruct((n_pad, fout), out_dtype),
        grid=grid,
        in_specs=[
            pl.BlockSpec((tm, tk), lambda i, k: (i, k)),     # A' row/col tile
            pl.BlockSpec((tk, fin), lambda i, k: (k, 0)),    # X col-block
            pl.BlockSpec((fin, fout), lambda i, k: (0, 0)),  # W (resident)
            pl.BlockSpec((1, fout), lambda i, k: (0, 0)),    # b (resident)
        ],
        out_specs=pl.BlockSpec((tm, fout), lambda i, k: (i, 0)),
        scratch_shapes=[pltpu.VMEM((tm, fin), jnp.float32)],
        compiler_params=pltpu.CompilerParams(
            dimension_semantics=("parallel", "arbitrary"),
            vmem_limit_bytes=64 * 1024 * 1024,
        ),
        cost_estimate=pl.CostEstimate(
            flops=flops, transcendentals=0, bytes_accessed=bytes_accessed),
    )(a_pad, x_pad, w_pad, b_pad)


def gin_forward(x, edge_index, params, *, eps=0.0, compute_dtype=jnp.float32):
    """Forward of the 2-layer GIN: conv2(relu(conv1(x)))."""
    n, in_dim = x.shape
    hidden_dim = params["w1"].shape[1]
    out_dim = params["w2"].shape[1]

    # Tiling: rows (TM) parallel, contraction axis (TK) arbitrary/accumulated.
    if n <= 1024:
        tm = min(256, _round_up(n, 8))
        n_pad = _round_up(n, tm)
        tk = n_pad                     # single K tile; X stays VMEM-resident
    else:
        tm, tk = 256, 512              # lcm = 512
        n_pad = _round_up(n, 512)

    fin_pad = _round_up(in_dim, 128)
    fhid_pad = _round_up(hidden_dim, 128)
    fout_pad = _round_up(out_dim, 128)

    # Dense sum-aggregation matrix with the GIN self term folded into the
    # diagonal:  A'[i,i] += (1 + eps);  A'[dst, src] += 1 per edge (duplicates
    # sum, matching PyG).  Data-dependent scatter stays in plain JAX.
    src, dst = edge_index[0], edge_index[1]
    a_pad = jnp.zeros((n_pad, n_pad), jnp.float32).at[dst, src].add(1.0)
    diag = jnp.arange(n_pad)
    a_pad = a_pad.at[diag, diag].add(1.0 + eps)
    a_pad = a_pad.astype(compute_dtype)

    x_pad = _pad2d(x, n_pad, fin_pad).astype(compute_dtype)
    w1 = _pad2d(params["w1"], fin_pad, fhid_pad).astype(compute_dtype)
    b1 = _pad2d(params["b1"], 1, fhid_pad).astype(jnp.float32)
    w2 = _pad2d(params["w2"], fhid_pad, fout_pad).astype(compute_dtype)
    b2 = _pad2d(params["b2"], 1, fout_pad).astype(jnp.float32)

    h1 = _gin_layer(a_pad, x_pad, w1, b1, apply_relu=True,
                    tm=tm, tk=tk, out_dtype=compute_dtype)
    h2 = _gin_layer(a_pad, h1, w2, b2, apply_relu=False,
                    tm=tm, tk=tk, out_dtype=jnp.float32)
    return h2[:n, :out_dim]


def gin_forward_ref(x, edge_index, params, eps=0.0):
    """Pure-JAX reference (exact GINConv semantics) for sanity checking."""
    n = x.shape[0]
    src, dst = edge_index[0], edge_index[1]
    a = jnp.zeros((n, n), jnp.float32).at[dst, src].add(1.0)
    h = (1.0 + eps) * x + a @ x
    h = jnp.maximum(h @ params["w1"] + params["b1"], 0.0)
    h = (1.0 + eps) * h + a @ h
    return h @ params["w2"] + params["b2"]


def init_params(key, in_dim, hidden_dim, out_dim):
    """Deterministic glorot-ish init; biases kept 2D (1, F) for TPU layout."""
    k1, k2 = jax.random.split(key, 2)

    def glorot(k, fan_in, fan_out):
        lim = (6.0 / (fan_in + fan_out)) ** 0.5
        return jax.random.uniform(k, (fan_in, fan_out), jnp.float32, -lim, lim)

    return {
        "w1": glorot(k1, in_dim, hidden_dim),
        "b1": jnp.zeros((1, hidden_dim), jnp.float32),
        "w2": glorot(k2, hidden_dim, out_dim),
        "b2": jnp.zeros((1, out_dim), jnp.float32),
    }


if __name__ == "__main__":
    N, E = 16, 40
    IN_DIM, HIDDEN_DIM, OUT_DIM = 8, 32, 16

    key = jax.random.PRNGKey(0)
    kx, ke, kp = jax.random.split(key, 3)

    x = jax.random.normal(kx, (N, IN_DIM), jnp.float32)
    edge_index = jax.random.randint(ke, (2, E), 0, N, dtype=jnp.int32)
    params = init_params(kp, IN_DIM, HIDDEN_DIM, OUT_DIM)

    ref = gin_forward_ref(x, edge_index, params)

    # f32 path (exact check).
    out = jax.block_until_ready(gin_forward(x, edge_index, params))
    assert out.shape == (N, OUT_DIM)
    assert jnp.allclose(out, ref, atol=1e-4, rtol=1e-4)

    # bf16 MXU-operand path (v6e/v7x throughput mode; f32 accumulation).
    out_bf16 = jax.block_until_ready(
        gin_forward(x, edge_index, params, compute_dtype=jnp.bfloat16))
    assert out_bf16.shape == (N, OUT_DIM)
    assert jnp.allclose(out_bf16, ref, atol=0.3, rtol=0.1)

    print("KERNEL_OK")
</pallas_src>

<mosaic_0001>
module attributes {stable_mosaic.version = 11 : i64} {
  func.func @_gin_layer_kernel(%arg0: i32, %arg1: i32, %arg2: memref<16x16xf32, #tpu.memory_space<vmem>>, %arg3: memref<16x128xf32, #tpu.memory_space<vmem>>, %arg4: memref<128x128xf32, #tpu.memory_space<vmem>>, %arg5: memref<1x128xf32, #tpu.memory_space<vmem>>, %arg6: memref<16x128xf32, #tpu.memory_space<vmem>>, %arg7: memref<16x128xf32, #tpu.memory_space<vmem>>) attributes {dimension_semantics = [#tpu.dimension_semantics<parallel>, #tpu.dimension_semantics<arbitrary>], iteration_bounds = array<i64: 1, 1>, scalar_prefetch = 0 : i64, scratch_operands = 1 : i64, tpu.core_type = #tpu.core_type<tc>, window_params = [{transform_indices = @transform_0, window_bounds = array<i64: 16, 16>}, {transform_indices = @transform_1, window_bounds = array<i64: 16, 128>}, {pipeline_mode = #tpu.pipeline_mode<synchronous>, transform_indices = @transform_2, window_bounds = array<i64: 128, 128>}, {pipeline_mode = #tpu.pipeline_mode<synchronous>, transform_indices = @transform_3, window_bounds = array<i64: 1, 128>}, {transform_indices = @transform_4, window_bounds = array<i64: 16, 128>}]} {
    %c0_i32 = arith.constant 0 : i32
    %0 = arith.cmpi eq, %arg1, %c0_i32 : i32
    %1 = arith.extui %0 : i1 to i32
    %c0_i32_0 = arith.constant 0 : i32
    %2 = arith.cmpi ne, %1, %c0_i32_0 : i32
    scf.if %2 {
      %cst_10 = arith.constant 0.000000e+00 : f32
      %12 = vector.broadcast %cst_10 : f32 to vector<16x128xf32>
      %c0_11 = arith.constant 0 : index
      %c0_12 = arith.constant 0 : index
      %13 = vector.load %arg7[%c0_11, %c0_12] : memref<16x128xf32, #tpu.memory_space<vmem>>, vector<16x128xf32>
      tpu.vector_store %arg7[%c0_11, %c0_12], %12 {strides = array<i32>} : memref<16x128xf32, #tpu.memory_space<vmem>>, vector<16x128xf32>,
    } else {
    }
    %c0 = arith.constant 0 : index
    %c0_1 = arith.constant 0 : index
    %3 = vector.load %arg7[%c0, %c0_1] : memref<16x128xf32, #tpu.memory_space<vmem>>, vector<16x128xf32>
    %c0_2 = arith.constant 0 : index
    %c0_3 = arith.constant 0 : index
    %4 = vector.load %arg2[%c0_2, %c0_3] : memref<16x16xf32, #tpu.memory_space<vmem>>, vector<16x16xf32>
    %c0_4 = arith.constant 0 : index
    %c0_5 = arith.constant 0 : index
    %5 = vector.load %arg3[%c0_4, %c0_5] : memref<16x128xf32, #tpu.memory_space<vmem>>, vector<16x128xf32>
    %cst = arith.constant dense<0.000000e+00> : vector<16x128xf32>
    %6 = tpu.matmul %4, %5, %cst {dimension_numbers = #tpu.dot_dimension_numbers<[1], [0], [0], [1], [0, 0, 1, 1], [], []>} : vector<16x16xf32>, vector<16x128xf32>, vector<16x128xf32> -> vector<16x128xf32>
    %7 = arith.addf %3, %6 : vector<16x128xf32>
    %c0_6 = arith.constant 0 : index
    %c0_7 = arith.constant 0 : index
    %8 = vector.load %arg7[%c0_6, %c0_7] : memref<16x128xf32, #tpu.memory_space<vmem>>, vector<16x128xf32>
    tpu.vector_store %arg7[%c0_6, %c0_7], %7 {strides = array<i32>} : memref<16x128xf32, #tpu.memory_space<vmem>>, vector<16x128xf32>,
    %c0_i32_8 = arith.constant 0 : i32
    %9 = arith.cmpi eq, %arg1, %c0_i32_8 : i32
    %10 = arith.extui %9 : i1 to i32
    %c0_i32_9 = arith.constant 0 : i32
    %11 = arith.cmpi ne, %10, %c0_i32_9 : i32
    scf.if %11 {
      %c0_10 = arith.constant 0 : index
      %c0_11 = arith.constant 0 : index
      %12 = vector.load %arg7[%c0_10, %c0_11] : memref<16x128xf32, #tpu.memory_space<vmem>>, vector<16x128xf32>
      %c0_12 = arith.constant 0 : index
      %c0_13 = arith.constant 0 : index
      %13 = vector.load %arg4[%c0_12, %c0_13] : memref<128x128xf32, #tpu.memory_space<vmem>>, vector<128x128xf32>
      %cst_14 = arith.constant dense<0.000000e+00> : vector<16x128xf32>
      %14 = tpu.matmul %12, %13, %cst_14 {dimension_numbers = #tpu.dot_dimension_numbers<[1], [0], [0], [1], [0, 0, 1, 1], [], []>} : vector<16x128xf32>, vector<128x128xf32>, vector<16x128xf32> -> vector<16x128xf32>
      %c0_15 = arith.constant 0 : index
      %c0_16 = arith.constant 0 : index
      %15 = vector.load %arg5[%c0_15, %c0_16] : memref<1x128xf32, #tpu.memory_space<vmem>>, vector<1x128xf32>
      %16 = vector.broadcast %15 : vector<1x128xf32> to vector<16x128xf32>
      %17 = arith.addf %14, %16 : vector<16x128xf32>
      %cst_17 = arith.constant 0.000000e+00 : f32
      %18 = vector.broadcast %cst_17 : f32 to vector<16x128xf32>
      %19 = arith.maximumf %17, %18 : vector<16x128xf32>
      %c0_18 = arith.constant 0 : index
      %c0_19 = arith.constant 0 : index
      %20 = vector.load %arg6[%c0_18, %c0_19] : memref<16x128xf32, #tpu.memory_space<vmem>>, vector<16x128xf32>
      tpu.vector_store %arg6[%c0_18, %c0_19], %19 {strides = array<i32>} : memref<16x128xf32, #tpu.memory_space<vmem>>, vector<16x128xf32>,
    } else {
    }
    return
  }
  func.func @transform_0(%arg0: i32, %arg1: i32) -> (i32, i32) {
    %c0_i32 = arith.constant 0 : i32
    return %arg0, %arg1 : i32, i32
  }
  func.func @transform_1(%arg0: i32, %arg1: i32) -> (i32, i32) {
    %c0_i32 = arith.constant 0 : i32
    %c0_i32_0 = arith.constant 0 : i32
    return %arg1, %c0_i32 : i32, i32
  }
  func.func @transform_2(%arg0: i32, %arg1: i32) -> (i32, i32) {
    %c0_i32 = arith.constant 0 : i32
    %c0_i32_0 = arith.constant 0 : i32
    %c0_i32_1 = arith.constant 0 : i32
    return %c0_i32, %c0_i32_0 : i32, i32
  }
  func.func @transform_3(%arg0: i32, %arg1: i32) -> (i32, i32) {
    %c0_i32 = arith.constant 0 : i32
    %c0_i32_0 = arith.constant 0 : i32
    %c0_i32_1 = arith.constant 0 : i32
    return %c0_i32, %c0_i32_0 : i32, i32
  }
  func.func @transform_4(%arg0: i32, %arg1: i32) -> (i32, i32) {
    %c0_i32 = arith.constant 0 : i32
    %c0_i32_0 = arith.constant 0 : i32
    return %arg0, %c0_i32 : i32, i32
  }
}

</mosaic_0001>

<llo_original>
// kernel: tpu_custom_call.1
$region0: #{tpu_custom_call.1}
  #allocation0 [shape = 'u32[]', space=smem, size = 0x4, offset = 0x4, fixed_abs, tag = 'smem constant byte address 0x4 - core index']
  #allocation1 [shape = 'u32[144,128]{1,0:T(1,128)}', space=vmem, size = 0x12000, scoped, tag = 'internal scratch']
  #allocation2 [shape = 'f32[16,128]{1,0:T(8,128)}', space=vmem, size = 0x2000, scoped, tag = 'scratch operand']
  %s0 = inlined_call_operand.hbm [shape: f32[16,16], index: 0, kind: input, shape index: {}]
  %s1 = inlined_call_operand.hbm [shape: f32[16,128], index: 1, kind: input, shape index: {}]
  %s2 = inlined_call_operand.hbm [shape: f32[128,128], index: 2, kind: input, shape index: {}]
  %s3 = inlined_call_operand.hbm [shape: f32[1,128], index: 3, kind: input, shape index: {}]
  %s4 = inlined_call_operand.hbm [shape: f32[16,128], index: 4, kind: output, shape index: {}]
  %s5 = sld [smem:[#allocation0]]
  $region50: #{tpu_custom_call.1} parent=0
    _
  %s7 = ssub.s32 1, %s5
  %s8 = scalar_select 0, %s7, %s5
  $region1: #{tpu_custom_call.1} parent=0
    #allocation3 [shape = 'u8[8192]{0}', space=vmem, size = 0x2000, scoped, tag = 'input window, operand 0, single buffered']
    #allocation4 [shape = 's32[1]{0}', space=sflag, size = 0x4, scoped, tag = 'scoped memory for tpu_custom_call.1']
    #allocation5 [shape = 's32[1]{0}', space=sflag, size = 0x4, scoped, tag = 'scoped memory for tpu_custom_call.1']
    #allocation6 [shape = 'u8[8192]{0}', space=vmem, size = 0x2000, scoped, tag = 'input window, operand 1, single buffered']
    #allocation7 [shape = 's32[1]{0}', space=sflag, size = 0x4, scoped, tag = 'scoped memory for tpu_custom_call.1']
    #allocation8 [shape = 'u8[65536]{0}', space=vmem, size = 0x10000, scoped, tag = 'input window, operand 2, single buffered']
    #allocation9 [shape = 'u8[512]{0}', space=vmem, size = 0x400, scoped, tag = 'input window, operand 3, single buffered']
    #allocation10 [shape = 's32[1]{0}', space=sflag, size = 0x4, scoped, tag = 'scoped memory for tpu_custom_call.1']
    #allocation11 [shape = 'u8[8192]{0}', space=vmem, size = 0x2000, scoped, tag = 'output window, operand 0, single buffered']
    %9 = vsyncpa [#allocation4], 0
    %10 = vsyncpa [#allocation7], 0
    %11 = vsyncpa [#allocation10], 0
    %12 = vsyncpa [#allocation5], 0
    // Predicated region
    $region2: #{tpu_custom_call.1} parent=1 // pred_check
      _
    $region3: #{tpu_custom_call.1} parent=1 // pred_check_branch
      %14 = sbr.rel (0) target = $region5
    $region4: #{tpu_custom_call.1} parent=1 // pred_region
      %s16 = ssub.s32 256, 256
      %17 = vsyncadd [#allocation4], %s16
      %s18 = sshll.u32 [#allocation3], 4
      %s19 = int_to_ptr.vmem [resolvable:$true] %s18
      %24 = dma.hbm_to_vmem [thread:$0]  %s0, 256, %s19, [#allocation4], 128, 128, 8
    $region5: #{tpu_custom_call.1} parent=1 // pred_fallthru
      _
    // Predicated region
    $region6: #{tpu_custom_call.1} parent=1 // pred_check
      _
    $region7: #{tpu_custom_call.1} parent=1 // pred_check_branch
      %26 = sbr.rel (0) target = $region9
    $region8: #{tpu_custom_call.1} parent=1 // pred_region
      %s28 = ssub.s32 256, 256
      %29 = vsyncadd [#allocation7], %s28
      %s30 = sshll.u32 [#allocation6], 4
      %s31 = int_to_ptr.vmem [resolvable:$true] %s30
      %36 = dma.hbm_to_vmem [thread:$0]  %s1, 256, %s31, [#allocation7], 128, 128, 8
    $region9: #{tpu_custom_call.1} parent=1 // pred_fallthru
      _
    // Predicated region
    $region10: #{tpu_custom_call.1} parent=1 // pred_check
      _
    $region11: #{tpu_custom_call.1} parent=1 // pred_check_branch
      %38 = sbr.rel (0) target = $region13
    $region12: #{tpu_custom_call.1} parent=1 // pred_region
      %s40 = ssub.s32 2048, 2048
      %41 = vsyncadd [#allocation7], %s40
      %s42 = sshll.u32 [#allocation8], 4
      %s43 = int_to_ptr.vmem [resolvable:$true] %s42
      %48 = dma.hbm_to_vmem [thread:$0]  %s2, 2048, %s43, [#allocation7], 128, 128, 8
    $region13: #{tpu_custom_call.1} parent=1 // pred_fallthru
      _
    // Predicated region
    $region14: #{tpu_custom_call.1} parent=1 // pred_check
      _
    $region15: #{tpu_custom_call.1} parent=1 // pred_check_branch
      %50 = sbr.rel (0) target = $region17
    $region16: #{tpu_custom_call.1} parent=1 // pred_region
      %s52 = ssub.s32 16, 16
      %53 = vsyncadd [#allocation10], %s52
      %s55 = sshll.u32 [#allocation9], 4
      %s56 = int_to_ptr.vmem [resolvable:$true] %s55
      %58 = dma.hbm_to_vmem [thread:$0]  %s3, 16, %s56, [#allocation10]
    $region17: #{tpu_custom_call.1} parent=1 // pred_fallthru
      _
    // Predicated region
    $region18: #{tpu_custom_call.1} parent=1 // pred_check
      _
    $region19: #{tpu_custom_call.1} parent=1 // pred_check_branch
      %60 = sbr.rel (0) target = $region21
    $region20: #{tpu_custom_call.1} parent=1 // pred_region
      %61 = dma.done [#allocation4], 256
    $region21: #{tpu_custom_call.1} parent=1 // pred_fallthru
      _
    // Predicated region
    $region22: #{tpu_custom_call.1} parent=1 // pred_check
      _
    $region23: #{tpu_custom_call.1} parent=1 // pred_check_branch
      %63 = sbr.rel (0) target = $region25
    $region24: #{tpu_custom_call.1} parent=1 // pred_region
      %64 = dma.done [#allocation7], 256
    $region25: #{tpu_custom_call.1} parent=1 // pred_fallthru
      _
    // Predicated region
    $region26: #{tpu_custom_call.1} parent=1 // pred_check
      _
    $region27: #{tpu_custom_call.1} parent=1 // pred_check_branch
      %66 = sbr.rel (0) target = $region29
    $region28: #{tpu_custom_call.1} parent=1 // pred_region
      %67 = dma.done [#allocation7], 2048
    $region29: #{tpu_custom_call.1} parent=1 // pred_fallthru
      _
    // Predicated region
    $region30: #{tpu_custom_call.1} parent=1 // pred_check
      _
    $region31: #{tpu_custom_call.1} parent=1 // pred_check_branch
      %69 = sbr.rel (0) target = $region33
    $region32: #{tpu_custom_call.1} parent=1 // pred_region
      %70 = dma.done [#allocation10], 16
    $region33: #{tpu_custom_call.1} parent=1 // pred_fallthru
      _
    %p71 = scmp.eq.s32.totalorder 0, 0
    // Predicated region
    $region34: #{tpu_custom_call.1} parent=1 // pred_check
      %p72 = pneg %p71
    $region35: #{tpu_custom_call.1} parent=1 // pred_check_branch
      %74 = sbr.rel (%p72) target = $region37
    $region36: #{tpu_custom_call.1} parent=1 // pred_region
      %75 = vst [vmem:[#allocation2] sm:$0xff] 0.0
      %76 = vst [vmem:[#allocation2 + $0x8] sm:$0xff] 0.0
    $region37: #{tpu_custom_call.1} parent=1 // pred_fallthru
      _
    %v77 = vld [vmem:[#allocation2] sm:$0xff]
    %v78 = vld [vmem:[#allocation2 + $0x8] sm:$0xff]
    %v79 = vld [vmem:[#allocation3] sm:$0xff]
    %v80 = vld [vmem:[#allocation3 + $0x8] sm:$0xff]
    %v81 = vld [vmem:[#allocation6] sm:$0xff]
    %v82 = vld [vmem:[#allocation6 + $0x8] sm:$0xff]
    %vm83 = vcmask 130048
    %v85 = vsel %vm83, %v79, 0
    %v88 = vsel %vm83, %v80, 0
    %90 = vmatprep.subr.mxu0 0.0
    %91 = vmatpush1.msra.mxu0 %v81
    %92 = vmatprep.subr.mxu0 0.0
    %93 = vmatpush1.msra.mxu0 %v82
    %94 = vmatprep.subr.mxu0 0.0
    %95 = vmatpush1.msra.mxu0 0.0
    %96 = vmatprep.subr.mxu0 0.0
    %97 = vmatpush1.msra.mxu0 0.0
    %98 = vmatprep.subr.mxu0 0.0
    %99 = vmatpush1.msra.mxu0 0.0
    %100 = vmatprep.subr.mxu0 0.0
    %101 = vmatpush1.msra.mxu0 0.0
    %102 = vmatprep.subr.mxu0 0.0
    %103 = vmatpush1.msra.mxu0 0.0
    %104 = vmatprep.subr.mxu0 0.0
    %105 = vmatpush1.msra.mxu0 0.0
    %106 = vmatprep.subr.mxu0 0.0
    %107 = vmatpush1.msra.mxu0 0.0
    %108 = vmatprep.subr.mxu0 0.0
    %109 = vmatpush1.msra.mxu0 0.0
    %110 = vmatprep.subr.mxu0 0.0
    %111 = vmatpush1.msra.mxu0 0.0
    %112 = vmatprep.subr.mxu0 0.0
    %113 = vmatpush1.msra.mxu0 0.0
    %114 = vmatprep.subr.mxu0 0.0
    %115 = vmatpush1.msra.mxu0 0.0
    %116 = vmatprep.subr.mxu0 0.0
    %117 = vmatpush1.msra.mxu0 0.0
    %118 = vmatprep.subr.mxu0 0.0
    %119 = vmatpush1.msra.mxu0 0.0
    %120 = vmatprep.subr.mxu0 0.0
    %121 = vmatpush1.msra.mxu0 0.0
    %122 = vmatprep.subr.mxu0 0.0
    %123 = vmatpush1.msra.mxu0 0.0
    %124 = vmatprep.subr.mxu0 0.0
    %125 = vmatpush1.msra.mxu0 0.0
    %126 = vmatprep.subr.mxu0 0.0
    %127 = vmatpush1.msra.mxu0 0.0
    %128 = vmatprep.subr.mxu0 0.0
    %129 = vmatpush1.msra.mxu0 0.0
    %130 = vmatprep.subr.mxu0 0.0
    %131 = vmatpush1.msra.mxu0 0.0
    %132 = vmatprep.subr.mxu0 0.0
    %133 = vmatpush1.msra.mxu0 0.0
    %134 = vmatprep.subr.mxu0 0.0
    %135 = vmatpush1.msra.mxu0 0.0
    %136 = vmatprep.subr.mxu0 0.0
    %137 = vmatpush1.msra.mxu0 0.0
    %138 = vmatprep.subr.mxu0 0.0
    %139 = vmatpush1.msra.mxu0 0.0
    %140 = vmatprep.subr.mxu0 0.0
    %141 = vmatpush1.msra.mxu0 0.0
    %142 = vmatprep.subr.mxu0 0.0
    %143 = vmatpush1.msra.mxu0 0.0
    %144 = vmatprep.subr.mxu0 0.0
    %145 = vmatpush1.msra.mxu0 0.0
    %146 = vmatprep.subr.mxu0 0.0
    %147 = vmatpush1.msra.mxu0 0.0
    %148 = vmatprep.subr.mxu0 0.0
    %149 = vmatpush1.msra.mxu0 0.0
    %150 = vmatprep.subr.mxu0 0.0
    %151 = vmatpush1.msra.mxu0 0.0
    %152 = vmatprep.subr.mxu0 0.0
    %153 = vmatpush1.msra.mxu0 0.0
    %154 = vmatprep.mubr.f32.mxu0 0.0
    %155 = vmatmul.mubr.f32.gmra.mrb[0].mxu0 %v85
    %v156 = vpop.f32.mrb[0].mxu0
    %v157 = vadd.f32 0.0, %v156
    %v158 = vpop.f32.mrb[0].mxu0
    %159 = vmatprep.mubr.f32.mxu0 0.0
    %160 = vmatmul.mubr.f32.gmra.mrb[0].mxu0 %v88
    %v161 = vpop.f32.mrb[0].mxu0
    %v162 = vadd.f32 0.0, %v161
    %v163 = vpop.f32.mrb[0].mxu0
    %164 = vdwg.mxu0
    %v165 = vadd.f32 %v77, %v157
    %v166 = vadd.f32 %v78, %v162
    %167 = vst [vmem:[#allocation2] sm:$0xff] %v165
    %168 = vst [vmem:[#allocation2 + $0x8] sm:$0xff] %v166
    // Predicated region
    $region38: #{tpu_custom_call.1} parent=1 // pred_check
      %p169 = pneg %p71
    $region39: #{tpu_custom_call.1} parent=1 // pred_check_branch
      %171 = sbr.rel (%p169) target = $region41
    $region40: #{tpu_custom_call.1} parent=1 // pred_region
      %v172 = vld [vmem:[#allocation2] sm:$0xff]
      %v173 = vld [vmem:[#allocation2 + $0x8] sm:$0xff]
      %v174 = vld [vmem:[#allocation8] sm:$0xff]
      %v175 = vld [vmem:[#allocation8 + $0x8] sm:$0xff]
      %v176 = vld [vmem:[#allocation8 + $0x10] sm:$0xff]
      %v177 = vld [vmem:[#allocation8 + $0x18] sm:$0xff]
      %v178 = vld [vmem:[#allocation8 + $0x20] sm:$0xff]
      %v179 = vld [vmem:[#allocation8 + $0x28] sm:$0xff]
      %v180 = vld [vmem:[#allocation8 + $0x30] sm:$0xff]
      %v181 = vld [vmem:[#allocation8 + $0x38] sm:$0xff]
      %v182 = vld [vmem:[#allocation8 + $0x40] sm:$0xff]
      %v183 = vld [vmem:[#allocation8 + $0x48] sm:$0xff]
      %v184 = vld [vmem:[#allocation8 + $0x50] sm:$0xff]
      %v185 = vld [vmem:[#allocation8 + $0x58] sm:$0xff]
      %v186 = vld [vmem:[#allocation8 + $0x60] sm:$0xff]
      %v187 = vld [vmem:[#allocation8 + $0x68] sm:$0xff]
      %v188 = vld [vmem:[#allocation8 + $0x70] sm:$0xff]
      %v189 = vld [vmem:[#allocation8 + $0x78] sm:$0xff]
      %v190 = vld [vmem:[#allocation9] sm:$0x1]
      %v192 = vlaneseq
      %v193 = vshrl.u32 %v192, 7
      %v194 = vsub.s32 0, %v193
      %v195 = vrot.slane %v190, %v194
      %197 = vmatprep.subr.mxu0 0.0
      %198 = vmatpush1.msra.mxu0 %v174
      %199 = vmatprep.subr.mxu0 0.0
      %200 = vmatpush1.msra.mxu0 %v175
      %201 = vmatprep.subr.mxu0 0.0
      %202 = vmatpush1.msra.mxu0 %v176
      %203 = vmatprep.subr.mxu0 0.0
      %204 = vmatpush1.msra.mxu0 %v177
      %205 = vmatprep.subr.mxu0 0.0
      %206 = vmatpush1.msra.mxu0 %v178
      %207 = vmatprep.subr.mxu0 0.0
      %208 = vmatpush1.msra.mxu0 %v179
      %209 = vmatprep.subr.mxu0 0.0
      %210 = vmatpush1.msra.mxu0 %v180
      %211 = vmatprep.subr.mxu0 0.0
      %212 = vmatpush1.msra.mxu0 %v181
      %213 = vmatprep.subr.mxu0 0.0
      %214 = vmatpush1.msra.mxu0 %v182
      %215 = vmatprep.subr.mxu0 0.0
      %216 = vmatpush1.msra.mxu0 %v183
      %217 = vmatprep.subr.mxu0 0.0
      %218 = vmatpush1.msra.mxu0 %v184
      %219 = vmatprep.subr.mxu0 0.0
      %220 = vmatpush1.msra.mxu0 %v185
      %221 = vmatprep.subr.mxu0 0.0
      %222 = vmatpush1.msra.mxu0 %v186
      %223 = vmatprep.subr.mxu0 0.0
      %224 = vmatpush1.msra.mxu0 %v187
      %225 = vmatprep.subr.mxu0 0.0
      %226 = vmatpush1.msra.mxu0 %v188
      %227 = vmatprep.subr.mxu0 0.0
      %228 = vmatpush1.msra.mxu0 %v189
      %229 = vmatprep.subr.mxu0 0.0
      %230 = vmatpush1.msra.mxu0 0.0
      %231 = vmatprep.subr.mxu0 0.0
      %232 = vmatpush1.msra.mxu0 0.0
      %233 = vmatprep.subr.mxu0 0.0
      %234 = vmatpush1.msra.mxu0 0.0
      %235 = vmatprep.subr.mxu0 0.0
      %236 = vmatpush1.msra.mxu0 0.0
      %237 = vmatprep.subr.mxu0 0.0
      %238 = vmatpush1.msra.mxu0 0.0
      %239 = vmatprep.subr.mxu0 0.0
      %240 = vmatpush1.msra.mxu0 0.0
      %241 = vmatprep.subr.mxu0 0.0
      %242 = vmatpush1.msra.mxu0 0.0
      %243 = vmatprep.subr.mxu0 0.0
      %244 = vmatpush1.msra.mxu0 0.0
      %245 = vmatprep.subr.mxu0 0.0
      %246 = vmatpush1.msra.mxu0 0.0
      %247 = vmatprep.subr.mxu0 0.0
      %248 = vmatpush1.msra.mxu0 0.0
      %249 = vmatprep.subr.mxu0 0.0
      %250 = vmatpush1.msra.mxu0 0.0
      %251 = vmatprep.subr.mxu0 0.0
      %252 = vmatpush1.msra.mxu0 0.0
      %253 = vmatprep.subr.mxu0 0.0
      %254 = vmatpush1.msra.mxu0 0.0
      %255 = vmatprep.subr.mxu0 0.0
      %256 = vmatpush1.msra.mxu0 0.0
      %257 = vmatprep.subr.mxu0 0.0
      %258 = vmatpush1.msra.mxu0 0.0
      %259 = vmatprep.subr.mxu0 0.0
      %260 = vmatpush1.msra.mxu0 0.0
      %261 = vmatprep.mubr.f32.mxu0 0.0
      %262 = vmatmul.mubr.f32.gmra.mrb[0].mxu0 %v172
      %v263 = vpop.f32.mrb[0].mxu0
      %v264 = vadd.f32 %v195, %v263
      %v265 = vpop.f32.mrb[0].mxu0
      %266 = vmatprep.mubr.f32.mxu0 0.0
      %267 = vmatmul.mubr.f32.gmra.mrb[0].mxu0 %v173
      %v268 = vpop.f32.mrb[0].mxu0
      %v269 = vadd.f32 %v195, %v268
      %v270 = vpop.f32.mrb[0].mxu0
      %271 = vdwg.mxu0
      %v272 = vmax.f32 %v264, 0.0
      %v273 = vmax.f32 %v269, 0.0
      %274 = vst [vmem:[#allocation11] sm:$0xff] %v272
      %275 = vst [vmem:[#allocation11 + $0x8] sm:$0xff] %v273
    $region41: #{tpu_custom_call.1} parent=1 // pred_fallthru
      _
    // Predicated region
    $region42: #{tpu_custom_call.1} parent=1 // pred_check
      _
    $region43: #{tpu_custom_call.1} parent=1 // pred_check_branch
      %277 = sbr.rel (0) target = $region45
    $region44: #{tpu_custom_call.1} parent=1 // pred_region
      %s279 = ssub.s32 256, 256
      %280 = vsyncadd [#allocation5], %s279
      %s281 = sshll.u32 [#allocation11], 4
      %s282 = int_to_ptr.vmem [resolvable:$true] %s281
      %287 = dma.vmem_to_hbm [thread:$0]  %s282, 256, %s4, [#allocation5], 128, 128, 8
    $region45: #{tpu_custom_call.1} parent=1 // pred_fallthru
      _
    // Predicated region
    $region46: #{tpu_custom_call.1} parent=1 // pred_check
      _
    $region47: #{tpu_custom_call.1} parent=1 // pred_check_branch
      %289 = sbr.rel (0) target = $region49
    $region48: #{tpu_custom_call.1} parent=1 // pred_region
      %290 = dma.done [#allocation5], 256
    $region49: #{tpu_custom_call.1} parent=1 // pred_fallthru
      _
    %291 = vsyncpa [#allocation4], 1
    %292 = vsyncpa [#allocation7], 1
    %293 = vsyncpa [#allocation10], 1
    %294 = vsyncpa [#allocation5], 1

</llo_original>
